<compile_context>
chip_gen: v6e
topology: v6e:2x2x1
jax: 0.10.0
libtpu: 0.0.40
codegen_flags: <defaults>
</compile_context>

<pallas_src>
import jax
import jax.numpy as jnp
from jax.experimental import pallas as pl
from jax.experimental.pallas import tpu as pltpu


# --------------------------------------------------------------------------
# Kernels
# --------------------------------------------------------------------------
def _gather_vmem_kernel(idx_ref, w_ref, o_ref):
    """Fast path: whole embedding table resident in VMEM.

    idx_ref : SMEM (B_pad,) int32 node indices (scalar prefetch).
    w_ref   : VMEM (N, D) full embedding table.
    o_ref   : VMEM (TILE_B, D) dense output block for this grid step.
    """
    i = pl.program_id(0)
    tile_b = o_ref.shape[0]
    base = i * tile_b
    # Static unrolled loop over rows of the tile: dynamic sublane-slice load
    # from the table, static dense store into the output block.
    for r in range(tile_b):
        node = idx_ref[base + r]
        o_ref[pl.ds(r, 1), :] = w_ref[pl.ds(node, 1), :]


def _gather_dma_kernel(idx_ref, w_hbm, o_ref, rows, sems):
    """Large-table path: weight stays in HBM; gather TILE_B rows per step with
    TILE_B concurrent async row-DMAs into a VMEM scratch, then store one dense
    (TILE_B, D) block.

    idx_ref : SMEM (B_pad,) int32 node indices (scalar prefetch).
    w_hbm   : HBM (N, D) embedding table (memory_space=pl.ANY).
    o_ref   : VMEM (TILE_B, D) output block.
    rows    : VMEM (TILE_B, D) scratch.
    sems    : DMA semaphores, shape (TILE_B,).
    """
    i = pl.program_id(0)
    tile_b = o_ref.shape[0]
    base = i * tile_b

    # Issue all row DMAs so many small HBM reads are in flight simultaneously.
    for r in range(tile_b):
        node = idx_ref[base + r]
        pltpu.make_async_copy(
            w_hbm.at[pl.ds(node, 1), :],
            rows.at[pl.ds(r, 1), :],
            sems.at[r],
        ).start()

    # Wait for all of them (descriptor shape only matters for the wait count).
    for r in range(tile_b):
        pltpu.make_async_copy(
            w_hbm.at[pl.ds(0, 1), :],
            rows.at[pl.ds(r, 1), :],
            sems.at[r],
        ).wait()

    # Single dense, unmasked store of the whole tile.
    o_ref[...] = rows[...]


# --------------------------------------------------------------------------
# Wrapper
# --------------------------------------------------------------------------
def _round_up(x, m):
    return ((x + m - 1) // m) * m


# Whole-table-in-VMEM fast path threshold (leaves plenty of headroom under the
# 16/32 MiB default scoped VMEM on v5e/v6e/v7x even with double buffering).
_FAST_PATH_MAX_TABLE_BYTES = 4 * 1024 * 1024


def node2vec_forward(weight, batch=None, *, force_dma=False, tile_b=None):
    """JAX/Pallas equivalent of Node2Vec.forward.

    weight : (num_nodes, embedding_dim) float embedding table.
    batch  : optional (B,) integer node indices.
    """
    n, d = weight.shape

    if batch is None:
        # `return emb` — the module returns the embedding tensor itself;
        # copying the whole table through VMEM would be pure wasted bandwidth.
        return weight

    b = batch.shape[0]
    idx = batch.astype(jnp.int32)

    # Rows-per-grid-step: multiple of 8 for sublane-dense output stores,
    # capped so unrolled per-tile code / in-flight DMA count stays modest.
    if tile_b is None:
        tile_b = min(64, _round_up(b, 8))
    tile_b = max(8, _round_up(int(tile_b), 8))
    b_pad = _round_up(b, tile_b)
    if b_pad != b:
        # Pad with node 0 (always a valid row); padded rows are sliced off below.
        idx = jnp.pad(idx, (0, b_pad - b))
    num_tiles = b_pad // tile_b

    itemsize = jnp.dtype(weight.dtype).itemsize
    table_bytes = n * d * itemsize
    use_fast = (not force_dma) and (table_bytes <= _FAST_PATH_MAX_TABLE_BYTES)

    if use_fast:
        cost = pl.CostEstimate(
            flops=0,
            transcendentals=0,
            bytes_accessed=table_bytes + b_pad * d * itemsize + b_pad * 4,
        )
        out = pl.pallas_call(
            _gather_vmem_kernel,
            out_shape=jax.ShapeDtypeStruct((b_pad, d), weight.dtype),
            grid_spec=pltpu.PrefetchScalarGridSpec(
                num_scalar_prefetch=1,
                grid=(num_tiles,),
                # Full-extent block: table is fetched once and stays in VMEM
                # (constant block index across the grid).
                in_specs=[pl.BlockSpec((n, d), lambda i, idx_ref: (0, 0))],
                out_specs=pl.BlockSpec((tile_b, d), lambda i, idx_ref: (i, 0)),
            ),
            compiler_params=pltpu.CompilerParams(
                dimension_semantics=("parallel",)),
            cost_estimate=cost,
        )(idx, weight)
    else:
        cost = pl.CostEstimate(
            flops=0,
            transcendentals=0,
            bytes_accessed=2 * b_pad * d * itemsize + b_pad * 4,
        )
        out = pl.pallas_call(
            _gather_dma_kernel,
            out_shape=jax.ShapeDtypeStruct((b_pad, d), weight.dtype),
            grid_spec=pltpu.PrefetchScalarGridSpec(
                num_scalar_prefetch=1,
                grid=(num_tiles,),
                in_specs=[pl.BlockSpec(memory_space=pl.ANY)],
                out_specs=pl.BlockSpec((tile_b, d), lambda i, idx_ref: (i, 0)),
                scratch_shapes=[
                    pltpu.VMEM((tile_b, d), weight.dtype),
                    pltpu.SemaphoreType.DMA((tile_b,)),
                ],
            ),
            compiler_params=pltpu.CompilerParams(
                dimension_semantics=("parallel",)),
            cost_estimate=cost,
        )(idx, weight)

    return out[:b] if b_pad != b else out


# --------------------------------------------------------------------------
# Self-test
# --------------------------------------------------------------------------
if __name__ == "__main__":
    key = jax.random.PRNGKey(0)
    k_emb, k_batch, k_batch2 = jax.random.split(key, 3)

    # Small deterministic ring graph, mirroring the module constructor's
    # edge_index argument (only used to derive num_nodes).
    num_nodes = 32
    embedding_dim = 128  # lane-aligned embedding size
    src = jnp.arange(num_nodes, dtype=jnp.int32)
    dst = (src + 1) % num_nodes
    edge_index = jnp.stack([src, dst], axis=0)          # (2, E)
    n = int(jnp.max(edge_index)) + 1                    # maybe_num_nodes

    # torch.nn.Embedding.reset_parameters() -> N(0, 1) init.
    emb_weight = jax.random.normal(k_emb, (n, embedding_dim), dtype=jnp.float32)

    # Example batches of node ids (one sublane-aligned, one needing padding).
    batch = jax.random.randint(k_batch, (8,), 0, n, dtype=jnp.int32)
    batch_odd = jax.random.randint(k_batch2, (5,), 0, n, dtype=jnp.int32)

    # forward(batch) — fast (table-in-VMEM) path.
    out_fast = jax.block_until_ready(node2vec_forward(emb_weight, batch))
    # forward(batch) — manual per-row DMA path (large-table code path).
    out_dma = jax.block_until_ready(
        node2vec_forward(emb_weight, batch, force_dma=True))
    # forward(batch) with non-multiple-of-8 batch size (pad + slice).
    out_odd = jax.block_until_ready(node2vec_forward(emb_weight, batch_odd))
    # forward(None)
    out_all = jax.block_until_ready(node2vec_forward(emb_weight, None))

    # Reference semantics: emb.index_select(0, batch)
    ref = jnp.take(emb_weight, batch, axis=0)
    ref_odd = jnp.take(emb_weight, batch_odd, axis=0)

    assert out_fast.shape == (batch.shape[0], embedding_dim)
    assert out_fast.dtype == emb_weight.dtype
    assert jnp.array_equal(out_fast, ref)
    assert jnp.array_equal(out_dma, ref)
    assert out_odd.shape == (batch_odd.shape[0], embedding_dim)
    assert jnp.array_equal(out_odd, ref_odd)
    assert jnp.array_equal(out_all, emb_weight)

    print("KERNEL_OK")
</pallas_src>

<mosaic_0001>
module attributes {stable_mosaic.version = 11 : i64} {
  func.func @_gather_vmem_kernel(%arg0: i32, %arg1: memref<8xi32, #tpu.memory_space<smem>>, %arg2: memref<32x128xf32, #tpu.memory_space<vmem>>, %arg3: memref<8x128xf32, #tpu.memory_space<vmem>>) attributes {dimension_semantics = [#tpu.dimension_semantics<parallel>], iteration_bounds = array<i64: 1>, scalar_prefetch = 1 : i64, scratch_operands = 0 : i64, tpu.core_type = #tpu.core_type<tc>, window_params = [{pipeline_mode = #tpu.pipeline_mode<synchronous>, transform_indices = @transform_0, window_bounds = array<i64: 32, 128>}, {transform_indices = @transform_1, window_bounds = array<i64: 8, 128>}]} {
    %c8_i32 = arith.constant 8 : i32
    %0 = arith.muli %arg0, %c8_i32 : i32
    %c0_i32 = arith.constant 0 : i32
    %1 = arith.addi %0, %c0_i32 : i32
    %2 = arith.index_cast %1 : i32 to index
    %3 = memref.load %arg1[%2] : memref<8xi32, #tpu.memory_space<smem>>
    %4 = arith.index_cast %3 : i32 to index
    %c0 = arith.constant 0 : index
    %5 = vector.load %arg2[%4, %c0] : memref<32x128xf32, #tpu.memory_space<vmem>>, vector<1x128xf32>
    %c0_0 = arith.constant 0 : index
    %c0_1 = arith.constant 0 : index
    %6 = vector.load %arg3[%c0_0, %c0_1] : memref<8x128xf32, #tpu.memory_space<vmem>>, vector<1x128xf32>
    tpu.vector_store %arg3[%c0_0, %c0_1], %5 {strides = array<i32>} : memref<8x128xf32, #tpu.memory_space<vmem>>, vector<1x128xf32>,
    %c1_i32 = arith.constant 1 : i32
    %7 = arith.addi %0, %c1_i32 : i32
    %8 = arith.index_cast %7 : i32 to index
    %9 = memref.load %arg1[%8] : memref<8xi32, #tpu.memory_space<smem>>
    %10 = arith.index_cast %9 : i32 to index
    %c0_2 = arith.constant 0 : index
    %11 = vector.load %arg2[%10, %c0_2] : memref<32x128xf32, #tpu.memory_space<vmem>>, vector<1x128xf32>
    %c1 = arith.constant 1 : index
    %c0_3 = arith.constant 0 : index
    %12 = vector.load %arg3[%c1, %c0_3] : memref<8x128xf32, #tpu.memory_space<vmem>>, vector<1x128xf32>
    tpu.vector_store %arg3[%c1, %c0_3], %11 {strides = array<i32>} : memref<8x128xf32, #tpu.memory_space<vmem>>, vector<1x128xf32>,
    %c2_i32 = arith.constant 2 : i32
    %13 = arith.addi %0, %c2_i32 : i32
    %14 = arith.index_cast %13 : i32 to index
    %15 = memref.load %arg1[%14] : memref<8xi32, #tpu.memory_space<smem>>
    %16 = arith.index_cast %15 : i32 to index
    %c0_4 = arith.constant 0 : index
    %17 = vector.load %arg2[%16, %c0_4] : memref<32x128xf32, #tpu.memory_space<vmem>>, vector<1x128xf32>
    %c2 = arith.constant 2 : index
    %c0_5 = arith.constant 0 : index
    %18 = vector.load %arg3[%c2, %c0_5] : memref<8x128xf32, #tpu.memory_space<vmem>>, vector<1x128xf32>
    tpu.vector_store %arg3[%c2, %c0_5], %17 {strides = array<i32>} : memref<8x128xf32, #tpu.memory_space<vmem>>, vector<1x128xf32>,
    %c3_i32 = arith.constant 3 : i32
    %19 = arith.addi %0, %c3_i32 : i32
    %20 = arith.index_cast %19 : i32 to index
    %21 = memref.load %arg1[%20] : memref<8xi32, #tpu.memory_space<smem>>
    %22 = arith.index_cast %21 : i32 to index
    %c0_6 = arith.constant 0 : index
    %23 = vector.load %arg2[%22, %c0_6] : memref<32x128xf32, #tpu.memory_space<vmem>>, vector<1x128xf32>
    %c3 = arith.constant 3 : index
    %c0_7 = arith.constant 0 : index
    %24 = vector.load %arg3[%c3, %c0_7] : memref<8x128xf32, #tpu.memory_space<vmem>>, vector<1x128xf32>
    tpu.vector_store %arg3[%c3, %c0_7], %23 {strides = array<i32>} : memref<8x128xf32, #tpu.memory_space<vmem>>, vector<1x128xf32>,
    %c4_i32 = arith.constant 4 : i32
    %25 = arith.addi %0, %c4_i32 : i32
    %26 = arith.index_cast %25 : i32 to index
    %27 = memref.load %arg1[%26] : memref<8xi32, #tpu.memory_space<smem>>
    %28 = arith.index_cast %27 : i32 to index
    %c0_8 = arith.constant 0 : index
    %29 = vector.load %arg2[%28, %c0_8] : memref<32x128xf32, #tpu.memory_space<vmem>>, vector<1x128xf32>
    %c4 = arith.constant 4 : index
    %c0_9 = arith.constant 0 : index
    %30 = vector.load %arg3[%c4, %c0_9] : memref<8x128xf32, #tpu.memory_space<vmem>>, vector<1x128xf32>
    tpu.vector_store %arg3[%c4, %c0_9], %29 {strides = array<i32>} : memref<8x128xf32, #tpu.memory_space<vmem>>, vector<1x128xf32>,
    %c5_i32 = arith.constant 5 : i32
    %31 = arith.addi %0, %c5_i32 : i32
    %32 = arith.index_cast %31 : i32 to index
    %33 = memref.load %arg1[%32] : memref<8xi32, #tpu.memory_space<smem>>
    %34 = arith.index_cast %33 : i32 to index
    %c0_10 = arith.constant 0 : index
    %35 = vector.load %arg2[%34, %c0_10] : memref<32x128xf32, #tpu.memory_space<vmem>>, vector<1x128xf32>
    %c5 = arith.constant 5 : index
    %c0_11 = arith.constant 0 : index
    %36 = vector.load %arg3[%c5, %c0_11] : memref<8x128xf32, #tpu.memory_space<vmem>>, vector<1x128xf32>
    tpu.vector_store %arg3[%c5, %c0_11], %35 {strides = array<i32>} : memref<8x128xf32, #tpu.memory_space<vmem>>, vector<1x128xf32>,
    %c6_i32 = arith.constant 6 : i32
    %37 = arith.addi %0, %c6_i32 : i32
    %38 = arith.index_cast %37 : i32 to index
    %39 = memref.load %arg1[%38] : memref<8xi32, #tpu.memory_space<smem>>
    %40 = arith.index_cast %39 : i32 to index
    %c0_12 = arith.constant 0 : index
    %41 = vector.load %arg2[%40, %c0_12] : memref<32x128xf32, #tpu.memory_space<vmem>>, vector<1x128xf32>
    %c6 = arith.constant 6 : index
    %c0_13 = arith.constant 0 : index
    %42 = vector.load %arg3[%c6, %c0_13] : memref<8x128xf32, #tpu.memory_space<vmem>>, vector<1x128xf32>
    tpu.vector_store %arg3[%c6, %c0_13], %41 {strides = array<i32>} : memref<8x128xf32, #tpu.memory_space<vmem>>, vector<1x128xf32>,
    %c7_i32 = arith.constant 7 : i32
    %43 = arith.addi %0, %c7_i32 : i32
    %44 = arith.index_cast %43 : i32 to index
    %45 = memref.load %arg1[%44] : memref<8xi32, #tpu.memory_space<smem>>
    %46 = arith.index_cast %45 : i32 to index
    %c0_14 = arith.constant 0 : index
    %47 = vector.load %arg2[%46, %c0_14] : memref<32x128xf32, #tpu.memory_space<vmem>>, vector<1x128xf32>
    %c7 = arith.constant 7 : index
    %c0_15 = arith.constant 0 : index
    %48 = vector.load %arg3[%c7, %c0_15] : memref<8x128xf32, #tpu.memory_space<vmem>>, vector<1x128xf32>
    tpu.vector_store %arg3[%c7, %c0_15], %47 {strides = array<i32>} : memref<8x128xf32, #tpu.memory_space<vmem>>, vector<1x128xf32>,
    return
  }
  func.func @transform_0(%arg0: i32, %arg1: memref<8xi32, #tpu.memory_space<smem>>) -> (i32, i32) {
    %c0_i32 = arith.constant 0 : i32
    %c0_i32_0 = arith.constant 0 : i32
    %c0_i32_1 = arith.constant 0 : i32
    return %c0_i32, %c0_i32_0 : i32, i32
  }
  func.func @transform_1(%arg0: i32, %arg1: memref<8xi32, #tpu.memory_space<smem>>) -> (i32, i32) {
    %c0_i32 = arith.constant 0 : i32
    %c0_i32_0 = arith.constant 0 : i32
    return %arg0, %c0_i32 : i32, i32
  }
}

</mosaic_0001>

<llo_original>
// kernel: tpu_custom_call.1
$region0: #{tpu_custom_call.1}
  #allocation0 [shape = 'u32[]', space=smem, size = 0x4, offset = 0x4, fixed_abs, tag = 'smem constant byte address 0x4 - core index']
  #allocation1 [shape = 'u32[144,128]{1,0:T(1,128)}', space=vmem, size = 0x12000, scoped, tag = 'internal scratch']
  #allocation2 [shape = 's32[1]{0}', space=sflag, size = 0x4, scoped, tag = 'scoped memory for tpu_custom_call.1']
  #allocation3 [shape = 'u8[512]{0}', space=smem, size = 0x200, scoped, tag = 'prefetched SMEM operand 0']
  %s0 = inlined_call_operand.hbm [shape: s32[8], index: 0, kind: input, shape index: {}]
  %s1 = inlined_call_operand.hbm [shape: f32[32,128], index: 1, kind: input, shape index: {}]
  %s2 = inlined_call_operand.hbm [shape: f32[8,128], index: 2, kind: output, shape index: {}]
  %s3 = sld [smem:[#allocation0]]
  $region18: #{tpu_custom_call.1} parent=0
    _
  %s5 = ssub.s32 1, %s3
  %s6 = scalar_select 0, %s5, %s3
  %8 = dma.hbm_to_smem %s0, 16, [#allocation3], [#allocation2]
  %9 = dma.done [#allocation2], 16
  %10 = sfence
  $region1: #{tpu_custom_call.1} parent=0
    #allocation4 [shape = 'u8[16384]{0}', space=vmem, size = 0x4000, scoped, tag = 'input window, operand 1, single buffered']
    #allocation5 [shape = 's32[1]{0}', space=sflag, size = 0x4, scoped, tag = 'scoped memory for tpu_custom_call.1']
    #allocation6 [shape = 's32[1]{0}', space=sflag, size = 0x4, scoped, tag = 'scoped memory for tpu_custom_call.1']
    #allocation7 [shape = 'u8[4096]{0}', space=vmem, size = 0x1000, scoped, tag = 'output window, operand 0, single buffered']
    %11 = vsyncpa [#allocation5], 0
    %12 = vsyncpa [#allocation6], 0
    // Predicated region
    $region2: #{tpu_custom_call.1} parent=1 // pred_check
      _
    $region3: #{tpu_custom_call.1} parent=1 // pred_check_branch
      %14 = sbr.rel (0) target = $region5
    $region4: #{tpu_custom_call.1} parent=1 // pred_region
      %s16 = ssub.s32 512, 512
      %17 = vsyncadd [#allocation5], %s16
      %s18 = sshll.u32 [#allocation4], 4
      %s19 = int_to_ptr.vmem [resolvable:$true] %s18
      %24 = dma.hbm_to_vmem [thread:$0]  %s1, 512, %s19, [#allocation5], 128, 128, 8
    $region5: #{tpu_custom_call.1} parent=1 // pred_fallthru
      _
    // Predicated region
    $region6: #{tpu_custom_call.1} parent=1 // pred_check
      _
    $region7: #{tpu_custom_call.1} parent=1 // pred_check_branch
      %26 = sbr.rel (0) target = $region9
    $region8: #{tpu_custom_call.1} parent=1 // pred_region
      %27 = dma.done [#allocation5], 512
    $region9: #{tpu_custom_call.1} parent=1 // pred_fallthru
      _
    %s28 = smul.u32 0, 8
    %s29 = sld [smem:[#allocation3 + %s28]]
    %s30 = scalar_lea.vmem [#allocation4], %s29
    %v31 = vld [vmem:[%s30] sm:$0x1]
    %32 = vst [vmem:[#allocation7] sm:$0x1] %v31
    %s33 = sadd.s32 %s28, 1
    %s34 = sld [smem:[#allocation3 + %s33]]
    %s35 = scalar_lea.vmem [#allocation4], %s34
    %v36 = vld [vmem:[%s35] sm:$0x1]
    %37 = vst [vmem:[#allocation7 + $0x1] sm:$0x1] %v36
    %s38 = sadd.s32 %s28, 2
    %s39 = sld [smem:[#allocation3 + %s38]]
    %s40 = scalar_lea.vmem [#allocation4], %s39
    %v41 = vld [vmem:[%s40] sm:$0x1]
    %42 = vst [vmem:[#allocation7 + $0x2] sm:$0x1] %v41
    %s43 = sadd.s32 %s28, 3
    %s44 = sld [smem:[#allocation3 + %s43]]
    %s45 = scalar_lea.vmem [#allocation4], %s44
    %v46 = vld [vmem:[%s45] sm:$0x1]
    %47 = vst [vmem:[#allocation7 + $0x3] sm:$0x1] %v46
    %s48 = sadd.s32 %s28, 4
    %s49 = sld [smem:[#allocation3 + %s48]]
    %s50 = scalar_lea.vmem [#allocation4], %s49
    %v51 = vld [vmem:[%s50] sm:$0x1]
    %52 = vst [vmem:[#allocation7 + $0x4] sm:$0x1] %v51
    %s53 = sadd.s32 %s28, 5
    %s54 = sld [smem:[#allocation3 + %s53]]
    %s55 = scalar_lea.vmem [#allocation4], %s54
    %v56 = vld [vmem:[%s55] sm:$0x1]
    %57 = vst [vmem:[#allocation7 + $0x5] sm:$0x1] %v56
    %s58 = sadd.s32 %s28, 6
    %s59 = sld [smem:[#allocation3 + %s58]]
    %s60 = scalar_lea.vmem [#allocation4], %s59
    %v61 = vld [vmem:[%s60] sm:$0x1]
    %62 = vst [vmem:[#allocation7 + $0x6] sm:$0x1] %v61
    %s63 = sadd.s32 %s28, 7
    %s64 = sld [smem:[#allocation3 + %s63]]
    %s65 = scalar_lea.vmem [#allocation4], %s64
    %v66 = vld [vmem:[%s65] sm:$0x1]
    %67 = vst [vmem:[#allocation7 + $0x7] sm:$0x1] %v66
    // Predicated region
    $region10: #{tpu_custom_call.1} parent=1 // pred_check
      _
    $region11: #{tpu_custom_call.1} parent=1 // pred_check_branch
      %69 = sbr.rel (0) target = $region13
    $region12: #{tpu_custom_call.1} parent=1 // pred_region
      %s71 = ssub.s32 128, 128
      %72 = vsyncadd [#allocation6], %s71
      %s74 = sshll.u32 [#allocation7], 4
      %s75 = int_to_ptr.vmem [resolvable:$true] %s74
      %77 = dma.vmem_to_hbm [thread:$0]  %s75, 128, %s2, [#allocation6]
    $region13: #{tpu_custom_call.1} parent=1 // pred_fallthru
      _
    // Predicated region
    $region14: #{tpu_custom_call.1} parent=1 // pred_check
      _
    $region15: #{tpu_custom_call.1} parent=1 // pred_check_branch
      %79 = sbr.rel (0) target = $region17
    $region16: #{tpu_custom_call.1} parent=1 // pred_region
      %80 = dma.done [#allocation6], 128
    $region17: #{tpu_custom_call.1} parent=1 // pred_fallthru
      _
    %81 = vsyncpa [#allocation5], 1
    %82 = vsyncpa [#allocation6], 1

</llo_original>
